<compile_context>
chip_gen: v6e
topology: v6e:2x2x1
jax: 0.10.0
libtpu: 0.0.40
codegen_flags: <defaults>
</compile_context>

<pallas_src>
import jax
import jax.numpy as jnp
import numpy as np
from jax.experimental import pallas as pl
from jax.experimental.pallas import tpu as pltpu

K = 2                    # kernel size of every ConvTranspose2d
CIN = COUT = 3           # channels
OH = OW = 6              # common output spatial size of the three branches
NPIX = OH * OW           # 36 output pixels
TAPS = 3 * CIN * K * K   # 36 real taps (branch, ci, kh, kw)

# vreg / MXU aligned padded shapes
COUT_PAD = 8             # sublane multiple for the output / W rows
ROWS_PAD = 40            # (TAPS + 1 bias row) -> next multiple of 8
LANE_PAD = 128           # lane-dense output width


def fused_convt_gemm_kernel(w_ref, x_ref, o_ref):
    """out = W @ X on the MXU (one vmatmul pass, unmasked lane-dense store).

    w_ref: VMEM (8, 40)   f32 -- rows 0..2: flipped conv-transpose weights per
                                 output channel; col 36: pre-summed bias;
                                 everything else zero.
    x_ref: VMEM (40, 128) f32 -- rows 0..35: im2col taps, row 36: ones (bias
                                 tap); cols 0..35: output pixels; rest zero.
    o_ref: VMEM (8, 128)  f32 -- real result lives in [0:3, 0:36].
    """
    o_ref[...] = jnp.dot(w_ref[...], x_ref[...],
                         preferred_element_type=jnp.float32)


def _prep_input(x, pad):
    # stride-1 transposed conv (padding=p, kernel=K) == correlation of the
    # input padded by q = K-1-p on each side (negative q => crop) with the
    # spatially flipped, (Cin,Cout)-transposed kernel.
    q = K - 1 - pad
    x = x[0]  # squeeze batch
    if q >= 0:
        return jnp.pad(x, ((0, 0), (q, q), (q, q)))
    return x[:, -q:q, -q:q]


def _prep_weight(w):
    # torch ConvTranspose2d weight (Cin, Cout, kh, kw) -> correlation weight
    # (Cout, Cin, kh, kw) with the spatial taps flipped.
    return jnp.transpose(w, (1, 0, 2, 3))[:, :, ::-1, ::-1]


@jax.jit
def fused_model(x1, x2, x3, params):
    (w0, b0), (w1, b1), (w2, b2) = params

    xa = _prep_input(x1, pad=0)   # (3, 7, 7)
    xb = _prep_input(x2, pad=2)   # (3, 7, 7)
    xc = _prep_input(x3, pad=0)   # (3, 7, 7)
    xs = jnp.stack([xa, xb, xc])  # (3, CIN, 7, 7)

    # im2col: row index = (branch, ci, kh, kw), col index = (oy, ox).
    wins = jnp.stack([xs[:, :, kh:kh + OH, kw:kw + OW]
                      for kh in range(K) for kw in range(K)], axis=2)
    xmat = wins.reshape(TAPS, NPIX)                                  # (36, 36)
    xmat = jnp.concatenate([xmat, jnp.ones((1, NPIX), jnp.float32)], axis=0)
    xmat = jnp.pad(xmat, ((0, ROWS_PAD - (TAPS + 1)),
                          (0, LANE_PAD - NPIX)))                     # (40, 128)

    # weight matrix: columns match the im2col row order; the last real column
    # holds the pre-summed bias (picked up by the ones row of X).
    wrows = jnp.concatenate(
        [_prep_weight(w).reshape(COUT, CIN * K * K) for w in (w0, w1, w2)],
        axis=1)                                                      # (3, 36)
    bsum = (b0 + b1 + b2).reshape(COUT, 1)
    wmat = jnp.concatenate([wrows, bsum], axis=1)                    # (3, 37)
    wmat = jnp.pad(wmat, ((0, COUT_PAD - COUT),
                          (0, ROWS_PAD - (TAPS + 1))))               # (8, 40)

    out = pl.pallas_call(
        fused_convt_gemm_kernel,
        out_shape=jax.ShapeDtypeStruct((COUT_PAD, LANE_PAD), jnp.float32),
        in_specs=[pl.BlockSpec(memory_space=pltpu.MemorySpace.VMEM),   # W
                  pl.BlockSpec(memory_space=pltpu.MemorySpace.VMEM)],  # X
        out_specs=pl.BlockSpec(memory_space=pltpu.MemorySpace.VMEM),
    )(wmat, xmat)

    return out[:COUT, :NPIX].reshape(1, COUT, OH, OW)


def _convt_ref(x, w, b, pad):
    """Numpy reference for ConvTranspose2d (stride=1), scatter form."""
    x = np.asarray(x, np.float32)
    w = np.asarray(w, np.float32)
    b = np.asarray(b, np.float32)
    n_, cin, h, wd = x.shape
    cout = w.shape[1]
    full = np.zeros((n_, cout, h + K - 1, wd + K - 1), np.float32)
    for n in range(n_):
        for ci in range(cin):
            for co in range(cout):
                for kh in range(K):
                    for kw in range(K):
                        full[n, co, kh:kh + h, kw:kw + wd] += x[n, ci] * w[ci, co, kh, kw]
    oh = h + K - 1 - 2 * pad
    ow = wd + K - 1 - 2 * pad
    return full[:, :, pad:pad + oh, pad:pad + ow] + b[None, :, None, None]


if __name__ == "__main__":
    key = jax.random.PRNGKey(0)
    ks = jax.random.split(key, 9)

    x1 = jax.random.normal(ks[0], (1, 3, 5, 5), jnp.float32)
    x2 = jax.random.normal(ks[1], (1, 3, 9, 9), jnp.float32)
    x3 = jax.random.normal(ks[2], (1, 3, 5, 5), jnp.float32)

    def init_wb(kw, kb):
        bound = 1.0 / np.sqrt(CIN * K * K)          # PyTorch-style uniform bound
        w = jax.random.uniform(kw, (CIN, COUT, K, K), jnp.float32, -bound, bound)
        b = jax.random.uniform(kb, (COUT,), jnp.float32, -bound, bound)
        return w, b

    params = [init_wb(ks[3], ks[4]), init_wb(ks[5], ks[6]), init_wb(ks[7], ks[8])]

    out = jax.block_until_ready(fused_model(x1, x2, x3, params))
    assert out.shape == (1, COUT, OH, OW) and out.dtype == jnp.float32

    ref = (_convt_ref(x1, *params[0], pad=0)
           + _convt_ref(x2, *params[1], pad=2)
           + _convt_ref(x3, *params[2], pad=0))
    np.testing.assert_allclose(np.asarray(out), ref, rtol=1e-4, atol=1e-4)

    print("KERNEL_OK")
</pallas_src>

<mosaic_0001>
module attributes {stable_mosaic.version = 11 : i64} {
  func.func @fused_convt_gemm_kernel(%arg0: memref<8x40xf32, #tpu.memory_space<vmem>>, %arg1: memref<40x128xf32, #tpu.memory_space<vmem>>, %arg2: memref<8x128xf32, #tpu.memory_space<vmem>>) attributes {dimension_semantics = [], scalar_prefetch = 0 : i64, scratch_operands = 0 : i64, tpu.core_type = #tpu.core_type<tc>} {
    %c0 = arith.constant 0 : index
    %c0_0 = arith.constant 0 : index
    %0 = vector.load %arg0[%c0, %c0_0] : memref<8x40xf32, #tpu.memory_space<vmem>>, vector<8x40xf32>
    %c0_1 = arith.constant 0 : index
    %c0_2 = arith.constant 0 : index
    %1 = vector.load %arg1[%c0_1, %c0_2] : memref<40x128xf32, #tpu.memory_space<vmem>>, vector<40x128xf32>
    %cst = arith.constant dense<0.000000e+00> : vector<8x128xf32>
    %2 = tpu.matmul %0, %1, %cst {dimension_numbers = #tpu.dot_dimension_numbers<[1], [0], [0], [1], [0, 0, 1, 1], [], []>} : vector<8x40xf32>, vector<40x128xf32>, vector<8x128xf32> -> vector<8x128xf32>
    %c0_3 = arith.constant 0 : index
    %c0_4 = arith.constant 0 : index
    %3 = vector.load %arg2[%c0_3, %c0_4] : memref<8x128xf32, #tpu.memory_space<vmem>>, vector<8x128xf32>
    tpu.vector_store %arg2[%c0_3, %c0_4], %2 {strides = array<i32>} : memref<8x128xf32, #tpu.memory_space<vmem>>, vector<8x128xf32>,
    return
  }
}

</mosaic_0001>

<llo_original>
// kernel: fused_model.1
$region0: #{fused_model.1}
  #allocation0 [shape = 'u32[]', space=smem, size = 0x4, offset = 0x4, fixed_abs, tag = 'smem constant byte address 0x4 - core index']
  #allocation1 [shape = 'u32[144,128]{1,0:T(1,128)}', space=vmem, size = 0x12000, scoped, tag = 'internal scratch']
  %s0 = inlined_call_operand.vmem [shape: f32[8,40], index: 0, kind: input, shape index: {}]
  %s1 = inlined_call_operand.vmem [shape: f32[40,128], index: 1, kind: input, shape index: {}]
  %s2 = inlined_call_operand.vmem [shape: f32[8,128], index: 2, kind: output, shape index: {}]
  %s3 = sld [smem:[#allocation0]]
  $region18: #{fused_model.1} parent=0
    _
  %s5 = ssub.s32 1, %s3
  %s6 = scalar_select 0, %s5, %s3
  // Predicated region
  $region2: #{fused_model.1} parent=0 // pred_check
    _
  $region3: #{fused_model.1} parent=0 // pred_check_branch
    %8 = sbr.rel (0) target = $region5
  $region4: #{fused_model.1} parent=0 // pred_region
    _
  $region5: #{fused_model.1} parent=0 // pred_fallthru
    _
  // Predicated region
  $region6: #{fused_model.1} parent=0 // pred_check
    _
  $region7: #{fused_model.1} parent=0 // pred_check_branch
    %10 = sbr.rel (0) target = $region9
  $region8: #{fused_model.1} parent=0 // pred_region
    _
  $region9: #{fused_model.1} parent=0 // pred_fallthru
    _
  %v11 = vld [vmem:[%s0] sm:$0xff]
  %v12 = vld [vmem:[%s1] sm:$0xff]
  %v13 = vld [vmem:[%s1 + $0x8] sm:$0xff]
  %v14 = vld [vmem:[%s1 + $0x10] sm:$0xff]
  %v15 = vld [vmem:[%s1 + $0x18] sm:$0xff]
  %v16 = vld [vmem:[%s1 + $0x20] sm:$0xff]
  %vm17 = vcmask 326656
  %v19 = vsel %vm17, %v11, 0
  %21 = vmatprep.subr.mxu0 0.0
  %22 = vmatpush1.msra.mxu0 0.0
  %23 = vmatprep.subr.mxu0 0.0
  %24 = vmatpush1.msra.mxu0 0.0
  %25 = vmatprep.subr.mxu0 0.0
  %26 = vmatpush1.msra.mxu0 0.0
  %27 = vmatprep.subr.mxu0 0.0
  %28 = vmatpush1.msra.mxu0 0.0
  %29 = vmatprep.subr.mxu0 0.0
  %30 = vmatpush1.msra.mxu0 0.0
  %31 = vmatprep.subr.mxu0 0.0
  %32 = vmatpush1.msra.mxu0 0.0
  %33 = vmatprep.subr.mxu0 0.0
  %34 = vmatpush1.msra.mxu0 0.0
  %35 = vmatprep.subr.mxu0 0.0
  %36 = vmatpush1.msra.mxu0 0.0
  %37 = vmatprep.subr.mxu0 0.0
  %38 = vmatpush1.msra.mxu0 0.0
  %39 = vmatprep.subr.mxu0 0.0
  %40 = vmatpush1.msra.mxu0 0.0
  %41 = vmatprep.subr.mxu0 0.0
  %42 = vmatpush1.msra.mxu0 0.0
  %43 = vmatprep.subr.mxu0 0.0
  %44 = vmatpush1.msra.mxu0 %v16
  %45 = vmatprep.subr.mxu0 0.0
  %46 = vmatpush1.msra.mxu0 %v15
  %47 = vmatprep.subr.mxu0 0.0
  %48 = vmatpush1.msra.mxu0 %v14
  %49 = vmatprep.subr.mxu0 0.0
  %50 = vmatpush1.msra.mxu0 %v13
  %51 = vmatprep.subr.mxu0 0.0
  %52 = vmatpush1.msra.mxu0 %v12
  %53 = vmatprep.subr.mxu0 0.0
  %54 = vmatpush2.msra.mxu0 0.0
  %55 = vmatprep.subr.mxu0 0.0
  %56 = vmatpush2.msra.mxu0 0.0
  %57 = vmatprep.subr.mxu0 0.0
  %58 = vmatpush2.msra.mxu0 0.0
  %59 = vmatprep.subr.mxu0 0.0
  %60 = vmatpush2.msra.mxu0 0.0
  %61 = vmatprep.subr.mxu0 0.0
  %62 = vmatpush2.msra.mxu0 0.0
  %63 = vmatprep.subr.mxu0 0.0
  %64 = vmatpush2.msra.mxu0 0.0
  %65 = vmatprep.subr.mxu0 0.0
  %66 = vmatpush2.msra.mxu0 0.0
  %67 = vmatprep.subr.mxu0 0.0
  %68 = vmatpush2.msra.mxu0 0.0
  %69 = vmatprep.subr.mxu0 0.0
  %70 = vmatpush2.msra.mxu0 0.0
  %71 = vmatprep.subr.mxu0 0.0
  %72 = vmatpush2.msra.mxu0 0.0
  %73 = vmatprep.subr.mxu0 0.0
  %74 = vmatpush2.msra.mxu0 0.0
  %75 = vmatprep.subr.mxu0 0.0
  %76 = vmatpush2.msra.mxu0 0.0
  %77 = vmatprep.subr.mxu0 0.0
  %78 = vmatpush2.msra.mxu0 0.0
  %79 = vmatprep.subr.mxu0 0.0
  %80 = vmatpush2.msra.mxu0 0.0
  %81 = vmatprep.subr.mxu0 0.0
  %82 = vmatpush2.msra.mxu0 0.0
  %83 = vmatprep.subr.mxu0 0.0
  %84 = vmatpush2.msra.mxu0 0.0
  %85 = vmatprep.mubr.f32.mxu0 0.0
  %86 = vmatmul.mubr.f32.gmra.mxu0 %v19
  %v87 = vpop.f32.mrf.mxu0
  %v88 = vadd.f32 0.0, %v87
  %v89 = vpop.f32.mrf.mxu0
  %90 = vdwg.mxu0
  %91 = vst [vmem:[%s2] sm:$0xff] %v88
  // Predicated region
  $region10: #{fused_model.1} parent=0 // pred_check
    _
  $region11: #{fused_model.1} parent=0 // pred_check_branch
    %93 = sbr.rel (0) target = $region13
  $region12: #{fused_model.1} parent=0 // pred_region
    _
  $region13: #{fused_model.1} parent=0 // pred_fallthru
    _
  // Predicated region
  $region14: #{fused_model.1} parent=0 // pred_check
    _
  $region15: #{fused_model.1} parent=0 // pred_check_branch
    %95 = sbr.rel (0) target = $region17
  $region16: #{fused_model.1} parent=0 // pred_region
    _
  $region17: #{fused_model.1} parent=0 // pred_fallthru
    _

</llo_original>
